<compile_context>
chip_gen: v6e
topology: v6e:2x2x1
jax: 0.10.0
libtpu: 0.0.40
codegen_flags: <defaults>
</compile_context>

<pallas_src>
import jax
import jax.numpy as jnp
from jax.experimental import pallas as pl
from jax.experimental.pallas import tpu as pltpu

_LANE = 128
# 4 MiB/buffer is the v7x-safe choice (64 MiB VMEM/TC, 32 MiB scoped default).
# Measured elementwise data shows gains flatten past ~4 MiB tiles, so we keep
# the same value on v5e/v6e rather than special-casing their 128 MiB VMEM.
_TARGET_TILE_BYTES = 4 * 1024 * 1024
_VMEM_LIMIT_BYTES = 32 * 1024 * 1024


def _elementwise_kernel(x_ref, o_ref):
    # forward: x * 2 + 3 - 1/2  ==  x * 2 + 2.5 (constants folded)
    o_ref[...] = x_ref[...] * 2.0 + 2.5


def _sublane_multiple(dtype):
    # native sublane packing: f32/i32 -> 8 rows/vreg, bf16/f16 -> 16, int8/fp8 -> 32
    itemsize = jnp.dtype(dtype).itemsize
    return 8 * max(1, 4 // itemsize)


def _round_up(v, m):
    return ((v + m - 1) // m) * m


def _choose_lane_width(total, max_lanes=8192):
    """Largest multiple of 128 dividing `total`, capped at max_lanes (None if not divisible)."""
    if total % _LANE != 0:
        return None
    k = min(max_lanes, total) // _LANE
    while k >= 1:
        cand = _LANE * k
        if total % cand == 0:
            return cand
        k -= 1
    return _LANE


def _to_lane_dense_2d(x):
    """View/reshape x as a lane-dense 2-D slab (elementwise op => layout-agnostic).

    Returns (x2d, pad_elems). pad_elems > 0 only on the pathological path where
    the element count is not a multiple of 128 and we zero-pad a flat copy.
    """
    total = x.size
    if x.ndim >= 2 and x.shape[-1] % _LANE == 0:
        # Natural layout is already lane-dense; free row-major reshape.
        return x.reshape(-1, x.shape[-1]), 0
    lanes = _choose_lane_width(total)
    if lanes is not None:
        # Narrow / non-128 last dim but total divides 128: flatten to wide lanes
        # so stores lower to unmasked vst instead of masked vst.msk.
        return x.reshape(total // lanes, lanes), 0
    # Pathological element count: pad a flat copy up to a 1024-lane slab.
    lanes = _LANE * 8
    padded = _round_up(max(total, 1), lanes)
    flat = jnp.pad(x.reshape(-1), (0, padded - total))
    return flat.reshape(padded // lanes, lanes), padded - total


def _fit_tile_m(tile_m, M, sub_m):
    # Block dims must be sublane/lane aligned OR equal to the full array dim.
    if tile_m >= M:
        return M
    return max(sub_m, (tile_m // sub_m) * sub_m)


def _tile_sizes(M, N, itemsize, target_tile_bytes, sub_m):
    # Single-block fast path — guarded: block itself is <= target_tile_bytes,
    # so the 2x double-buffered footprint stays far below the VMEM limit.
    if M * N * itemsize <= target_tile_bytes:
        return M, N, 1, 1

    # Lane (last-dim) tiling: keep full N if a minimal-row slab fits the budget,
    # otherwise cap to a multiple of 128 (N is guaranteed a multiple of 128 here).
    if sub_m * N * itemsize <= target_tile_bytes:
        tile_n = N
    else:
        tile_n = max(_LANE, ((target_tile_bytes // (sub_m * itemsize)) // _LANE) * _LANE)
        tile_n = min(tile_n, N)
    grid_n = pl.cdiv(N, tile_n)

    # Sublane (second-to-last dim) tiling within the per-buffer byte budget.
    tile_m = (target_tile_bytes // (tile_n * itemsize)) // sub_m * sub_m
    tile_m = _fit_tile_m(max(sub_m, tile_m), M, sub_m)
    grid_m = pl.cdiv(M, tile_m)

    # Even-ish split along M: avoid a ragged, overhead-dominated tail block.
    tile_m = _fit_tile_m(_round_up(pl.cdiv(M, grid_m), sub_m), M, sub_m)
    grid_m = pl.cdiv(M, tile_m)

    # v7x has 2 TensorCores: prefer an even number of parallel grid steps so the
    # last iteration doesn't leave one core idle.
    if grid_m * grid_n > 1 and (grid_m * grid_n) % 2 == 1:
        alt_tile_m = _fit_tile_m(_round_up(pl.cdiv(M, grid_m + 1), sub_m), M, sub_m)
        alt_grid_m = pl.cdiv(M, alt_tile_m)
        if (alt_grid_m * grid_n) % 2 == 0:
            tile_m, grid_m = alt_tile_m, alt_grid_m

    return tile_m, tile_n, grid_m, grid_n


def pt_module_forward(x, *, target_tile_bytes=_TARGET_TILE_BYTES):
    """Elementwise x*2 + 2.5 on lane-dense 2-D tiles, double-buffered by BlockSpec."""
    orig_shape = x.shape
    itemsize = jnp.dtype(x.dtype).itemsize
    sub_m = _sublane_multiple(x.dtype)

    x2d, pad_elems = _to_lane_dense_2d(x)
    M, N = x2d.shape
    tile_m, tile_n, grid_m, grid_n = _tile_sizes(M, N, itemsize, target_tile_bytes, sub_m)

    out2d = pl.pallas_call(
        _elementwise_kernel,
        out_shape=jax.ShapeDtypeStruct((M, N), x.dtype),
        grid=(grid_m, grid_n),
        in_specs=[pl.BlockSpec((tile_m, tile_n), lambda i, j: (i, j))],
        out_specs=pl.BlockSpec((tile_m, tile_n), lambda i, j: (i, j)),
        compiler_params=pltpu.CompilerParams(
            dimension_semantics=("parallel", "parallel"),
            vmem_limit_bytes=_VMEM_LIMIT_BYTES,
        ),
        cost_estimate=pl.CostEstimate(
            flops=2 * M * N,
            transcendentals=0,
            bytes_accessed=2 * M * N * itemsize,
        ),
    )(x2d)

    if pad_elems:
        out2d = out2d.reshape(-1)[: x.size]
    return out2d.reshape(orig_shape)


if __name__ == "__main__":
    key = jax.random.PRNGKey(0)
    # Small 4-D input consistent with the elementwise forward (layout-agnostic).
    x = jax.random.normal(key, (2, 4, 16, 16), dtype=jnp.float32)

    out = pt_module_forward(x)
    out = jax.block_until_ready(out)

    ref = x * 2 + 3 - 1 / 2
    assert out.shape == x.shape
    assert jnp.allclose(out, ref, atol=1e-6), "mismatch vs reference"
    print("KERNEL_OK")
</pallas_src>

<mosaic_0001>
module attributes {stable_mosaic.version = 11 : i64} {
  func.func @_elementwise_kernel(%arg0: i32, %arg1: i32, %arg2: memref<1x2048xf32, #tpu.memory_space<vmem>>, %arg3: memref<1x2048xf32, #tpu.memory_space<vmem>>) attributes {dimension_semantics = [#tpu.dimension_semantics<parallel>, #tpu.dimension_semantics<parallel>], iteration_bounds = array<i64: 1, 1>, scalar_prefetch = 0 : i64, scratch_operands = 0 : i64, tpu.core_type = #tpu.core_type<tc>, window_params = [{transform_indices = @transform_0, window_bounds = array<i64: 1, 2048>}, {transform_indices = @transform_1, window_bounds = array<i64: 1, 2048>}]} {
    %c0 = arith.constant 0 : index
    %c0_0 = arith.constant 0 : index
    %0 = vector.load %arg2[%c0, %c0_0] : memref<1x2048xf32, #tpu.memory_space<vmem>>, vector<1x2048xf32>
    %cst = arith.constant 2.000000e+00 : f32
    %1 = vector.broadcast %cst : f32 to vector<1x2048xf32>
    %2 = arith.mulf %0, %1 : vector<1x2048xf32>
    %cst_1 = arith.constant 2.500000e+00 : f32
    %3 = vector.broadcast %cst_1 : f32 to vector<1x2048xf32>
    %4 = arith.addf %2, %3 : vector<1x2048xf32>
    %c0_2 = arith.constant 0 : index
    %c0_3 = arith.constant 0 : index
    %5 = vector.load %arg3[%c0_2, %c0_3] : memref<1x2048xf32, #tpu.memory_space<vmem>>, vector<1x2048xf32>
    tpu.vector_store %arg3[%c0_2, %c0_3], %4 {strides = array<i32>} : memref<1x2048xf32, #tpu.memory_space<vmem>>, vector<1x2048xf32>,
    return
  }
  func.func @transform_0(%arg0: i32, %arg1: i32) -> (i32, i32) {
    %c0_i32 = arith.constant 0 : i32
    return %arg0, %arg1 : i32, i32
  }
  func.func @transform_1(%arg0: i32, %arg1: i32) -> (i32, i32) {
    %c0_i32 = arith.constant 0 : i32
    return %arg0, %arg1 : i32, i32
  }
}

</mosaic_0001>

<llo_original>
// kernel: tpu_custom_call.1
$region0: #{tpu_custom_call.1}
  #allocation0 [shape = 'u32[]', space=smem, size = 0x4, offset = 0x4, fixed_abs, tag = 'smem constant byte address 0x4 - core index']
  #allocation1 [shape = 'u32[144,128]{1,0:T(1,128)}', space=vmem, size = 0x12000, scoped, tag = 'internal scratch']
  %s0 = inlined_call_operand.hbm [shape: f32[1,2048], index: 0, kind: input, shape index: {}]
  %s1 = inlined_call_operand.hbm [shape: f32[1,2048], index: 1, kind: output, shape index: {}]
  %s2 = sld [smem:[#allocation0]]
  $region18: #{tpu_custom_call.1} parent=0
    _
  %s4 = ssub.s32 1, %s2
  %s5 = scalar_select 0, %s4, %s2
  $region1: #{tpu_custom_call.1} parent=0
    #allocation2 [shape = 'u8[8192]{0}', space=vmem, size = 0x2000, scoped, tag = 'input window, operand 0, single buffered']
    #allocation3 [shape = 's32[1]{0}', space=sflag, size = 0x4, scoped, tag = 'scoped memory for tpu_custom_call.1']
    #allocation4 [shape = 's32[1]{0}', space=sflag, size = 0x4, scoped, tag = 'scoped memory for tpu_custom_call.1']
    #allocation5 [shape = 'u8[8192]{0}', space=vmem, size = 0x2000, scoped, tag = 'output window, operand 0, single buffered']
    %6 = vsyncpa [#allocation3], 0
    %7 = vsyncpa [#allocation4], 0
    // Predicated region
    $region2: #{tpu_custom_call.1} parent=1 // pred_check
      _
    $region3: #{tpu_custom_call.1} parent=1 // pred_check_branch
      %9 = sbr.rel (0) target = $region5
    $region4: #{tpu_custom_call.1} parent=1 // pred_region
      %s11 = ssub.s32 256, 256
      %12 = vsyncadd [#allocation3], %s11
      %s14 = sshll.u32 [#allocation2], 4
      %s15 = int_to_ptr.vmem [resolvable:$true] %s14
      %17 = dma.hbm_to_vmem [thread:$0]  %s0, 256, %s15, [#allocation3]
    $region5: #{tpu_custom_call.1} parent=1 // pred_fallthru
      _
    // Predicated region
    $region6: #{tpu_custom_call.1} parent=1 // pred_check
      _
    $region7: #{tpu_custom_call.1} parent=1 // pred_check_branch
      %19 = sbr.rel (0) target = $region9
    $region8: #{tpu_custom_call.1} parent=1 // pred_region
      %20 = dma.done [#allocation3], 256
    $region9: #{tpu_custom_call.1} parent=1 // pred_fallthru
      _
    %v21 = vld [vmem:[#allocation2] sm:$0xff]
    %v22 = vld [vmem:[#allocation2 + $0x8] sm:$0xff]
    %v23 = vmul.f32 %v21, 2.0
    %v24 = vmul.f32 %v22, 2.0
    %v25 = vadd.f32 %v23, 2.5
    %v26 = vadd.f32 %v24, 2.5
    %27 = vst [vmem:[#allocation5] sm:$0xff] %v25
    %28 = vst [vmem:[#allocation5 + $0x8] sm:$0xff] %v26
    // Predicated region
    $region10: #{tpu_custom_call.1} parent=1 // pred_check
      _
    $region11: #{tpu_custom_call.1} parent=1 // pred_check_branch
      %30 = sbr.rel (0) target = $region13
    $region12: #{tpu_custom_call.1} parent=1 // pred_region
      %s32 = ssub.s32 256, 256
      %33 = vsyncadd [#allocation4], %s32
      %s35 = sshll.u32 [#allocation5], 4
      %s36 = int_to_ptr.vmem [resolvable:$true] %s35
      %38 = dma.vmem_to_hbm [thread:$0]  %s36, 256, %s1, [#allocation4]
    $region13: #{tpu_custom_call.1} parent=1 // pred_fallthru
      _
    // Predicated region
    $region14: #{tpu_custom_call.1} parent=1 // pred_check
      _
    $region15: #{tpu_custom_call.1} parent=1 // pred_check_branch
      %40 = sbr.rel (0) target = $region17
    $region16: #{tpu_custom_call.1} parent=1 // pred_region
      %41 = dma.done [#allocation4], 256
    $region17: #{tpu_custom_call.1} parent=1 // pred_fallthru
      _
    %42 = vsyncpa [#allocation3], 1
    %43 = vsyncpa [#allocation4], 1

</llo_original>
